<compile_context>
chip_gen: v7x
topology: tpu7x:2x2x1
jax: 0.10.0
libtpu: 0.0.40
codegen_flags: <defaults>
</compile_context>

<pallas_src>
import functools

import jax
import jax.numpy as jnp
from jax.experimental import pallas as pl
from jax.experimental.pallas import tpu as pltpu

_LANES = 128
_ROW_UNIT = 32       # rows kept a multiple of 32: safe tiling for f32/bf16/int8
_TILE_ROWS = 8192    # (8192,128) f32 block = 4 MiB / input / buffer
_INNER_ROWS = 512    # in-kernel chunk: keeps f32 temporaries ~0.25 MiB each
_NSPLIT = 2          # leading "parallel" grid axis -> 2 TensorCores on v7x


def _edge_loss_kernel(x_ref, t_ref, out_ref, *,
                      block_rows, inner_rows, blocks_per_split,
                      num_blocks, valid_rows, gate_oob, mask_rows):
    c = pl.program_id(0)   # parallel split (megacore sharding on v7x)
    i = pl.program_id(1)   # sequential reduction axis
    blk = c * blocks_per_split + i

    @pl.when(i == 0)
    def _init():
        out_ref[...] = jnp.zeros_like(out_ref)

    g = inner_rows // 8
    n_inner = block_rows // inner_rows

    def step(start):
        x = x_ref[pl.ds(start, inner_rows), :].astype(jnp.float32)
        t = t_ref[pl.ds(start, inner_rows), :].astype(jnp.float32)
        if mask_rows:
            # Rows past the end of the (padded) slab come from an edge-block
            # DMA and may be garbage/NaN: force them into the ignore class
            # with finite logits.  Row-level compare only (sub-row raggedness
            # is already handled by wrapper padding with t=2).
            row = jax.lax.broadcasted_iota(jnp.int32, (inner_rows, 1), 0)
            ok = (blk * block_rows + start + row) < valid_rows
            x = jnp.where(ok, x, 0.0)
            t = jnp.where(ok, t, 2.0)

        # View as (g, 8, 128) so the reductions below are pure elementwise
        # vreg adds over the leading axis (VPU only; no per-step XLU reduce).
        x = x.reshape(g, 8, _LANES)
        t = t.reshape(g, 8, _LANES)

        # Numerically-stable binary_cross_entropy_with_logits (per element).
        bce = jnp.maximum(x, 0.0) - x * t + jnp.log1p(jnp.exp(-jnp.abs(x)))
        pos = t == 1.0
        neg = t == 0.0

        out_ref[0, 0, :, :] += jnp.sum(pos.astype(jnp.float32), axis=0)
        out_ref[0, 1, :, :] += jnp.sum(neg.astype(jnp.float32), axis=0)
        out_ref[0, 2, :, :] += jnp.sum(jnp.where(pos, bce, 0.0), axis=0)
        out_ref[0, 3, :, :] += jnp.sum(jnp.where(neg, bce, 0.0), axis=0)

    def compute():
        if n_inner == 1:
            step(0)
        else:
            def body(j, carry):
                step(pl.multiple_of(j * inner_rows, inner_rows))
                return carry
            jax.lax.fori_loop(0, n_inner, body, 0)

    if gate_oob:
        # Clamped duplicate blocks (ragged 2-way split) skip all VPU work.
        pl.when(blk < num_blocks)(compute)
    else:
        compute()


def edge_loss(inputs, targets, edge_weight=1.0, *,
              tile_rows=_TILE_ROWS, nsplit=_NSPLIT):
    """Pallas TPU implementation of EdgeLoss.forward(inputs, targets)."""
    assert inputs.shape == targets.shape
    n_total = int(inputs.size)
    assert n_total > 0

    # Flatten in native dtype (bf16 logits / int8 targets are fine: the kernel
    # upcasts in-register, halving-or-better the HBM traffic of this
    # bandwidth-bound reduction).  NCHW order is irrelevant (global reduction).
    x = jnp.reshape(inputs, (-1,))
    t = jnp.reshape(targets, (-1,))

    # Pad to a lane-dense (rows, 128) slab with rows % 32 == 0.  Pad targets
    # with 2 (">1" ignore class) and logits with 0, so pad elements contribute
    # exactly zero to every accumulator -> no per-element mask needed for them.
    unit = _ROW_UNIT * _LANES
    padded = pl.cdiv(n_total, unit) * unit
    if padded != n_total:
        x = jnp.pad(x, (0, padded - n_total))                      # logits = 0
        t = jnp.pad(t, (0, padded - n_total), constant_values=2)   # ignore
    rows = padded // _LANES
    x2 = x.reshape(rows, _LANES)
    t2 = t.reshape(rows, _LANES)

    tile_rows = max(_ROW_UNIT, (int(tile_rows) // _ROW_UNIT) * _ROW_UNIT)
    block_rows = min(tile_rows, rows)
    num_blocks = pl.cdiv(rows, block_rows)
    nsplit_eff = nsplit if num_blocks >= 2 * nsplit else 1
    blocks_per_split = pl.cdiv(num_blocks, nsplit_eff)

    # Static flags: only pay for masking / gating code when actually needed.
    gate_oob = (nsplit_eff * blocks_per_split != num_blocks)
    mask_rows = (rows % block_rows != 0)

    # Inner chunk size (static): largest multiple of 32 dividing block_rows,
    # capped at _INNER_ROWS, so in-kernel f32 temporaries stay small even for
    # multi-MiB DMA tiles (keeps VMEM pressure flat, esp. on v7x's 64 MiB).
    if block_rows <= _INNER_ROWS:
        inner_rows = block_rows
    else:
        inner_rows = _ROW_UNIT
        for cand in range(_INNER_ROWS, _ROW_UNIT - 1, -_ROW_UNIT):
            if block_rows % cand == 0:
                inner_rows = cand
                break

    # VMEM budget: double-buffered input blocks + headroom for temporaries.
    dbuf_bytes = 2 * block_rows * _LANES * (x2.dtype.itemsize + t2.dtype.itemsize)
    vmem_limit = int(max(32 << 20, min(96 << 20, dbuf_bytes + (24 << 20))))

    def in_map(c, i):
        # Clamp so a ragged split never issues an out-of-bounds block DMA;
        # such tiles are compute-gated off inside the kernel.
        return (jnp.minimum(c * blocks_per_split + i, num_blocks - 1), 0)

    kernel = functools.partial(
        _edge_loss_kernel,
        block_rows=block_rows, inner_rows=inner_rows,
        blocks_per_split=blocks_per_split, num_blocks=num_blocks,
        valid_rows=rows, gate_oob=gate_oob, mask_rows=mask_rows)

    parts = pl.pallas_call(
        kernel,
        out_shape=jax.ShapeDtypeStruct((nsplit_eff, 4, 8, _LANES), jnp.float32),
        grid_spec=pltpu.PrefetchScalarGridSpec(
            num_scalar_prefetch=0,
            grid=(nsplit_eff, blocks_per_split),
            in_specs=[
                pl.BlockSpec((block_rows, _LANES), in_map),
                pl.BlockSpec((block_rows, _LANES), in_map),
            ],
            out_specs=pl.BlockSpec((1, 4, 8, _LANES),
                                   lambda c, i: (c, 0, 0, 0)),
        ),
        compiler_params=pltpu.CompilerParams(
            dimension_semantics=("parallel", "arbitrary"),
            vmem_limit_bytes=vmem_limit),
    )(x2, t2)

    # Tiny epilogue (a few KB): combine per-core / per-lane partials and apply
    # the EdgeLoss normalization.
    sums = jnp.sum(parts, axis=(0, 2, 3))      # (4,) = pos_n, neg_n, spos, sneg
    pos_n, neg_n, spos, sneg = sums[0], sums[1], sums[2], sums[3]
    sum_n = pos_n + neg_n
    # sum_i w_i*bce_i = (neg_n/sum_n)*sum_{t==1} bce + (pos_n/sum_n)*sum_{t==0} bce
    # (NaN when no labeled pixels, matching the PyTorch 0/0 behavior.)
    weighted_sum = (neg_n * spos + pos_n * sneg) / sum_n
    return jnp.float32(20.0 * edge_weight) * weighted_sum / jnp.float32(n_total)


def _ref_edge_loss(inputs, targets, edge_weight=1.0):
    """Pure-JAX reference mirroring the PyTorch module exactly."""
    x = inputs.astype(jnp.float32).reshape(-1)
    t = targets.astype(jnp.float32).reshape(-1)
    pos = t == 1.0
    neg = t == 0.0
    pos_n = jnp.sum(pos.astype(jnp.float32))
    neg_n = jnp.sum(neg.astype(jnp.float32))
    sum_n = pos_n + neg_n
    w = jnp.where(pos, neg_n / sum_n, jnp.where(neg, pos_n / sum_n, 0.0))
    bce = jnp.maximum(x, 0.0) - x * t + jnp.log1p(jnp.exp(-jnp.abs(x)))
    return edge_weight * 20.0 * jnp.mean(w * bce)


def _make_inputs(key, shape):
    k1, k2, k3 = jax.random.split(key, 3)
    logits = jax.random.normal(k1, shape, dtype=jnp.float32)
    tgt = jax.random.bernoulli(k2, 0.3, shape).astype(jnp.float32)
    ignore = jax.random.bernoulli(k3, 0.05, shape)
    tgt = jnp.where(ignore, jnp.float32(2.0), tgt)   # ">1" ignore labels
    return logits, tgt


if __name__ == "__main__":
    key = jax.random.PRNGKey(0)
    k_a, k_b, k_c, k_d = jax.random.split(key, 4)

    # 1) Basic NCHW case (single block, no masks).
    x_a, t_a = _make_inputs(k_a, (2, 4, 16, 16))
    loss_a = jax.block_until_ready(edge_loss(x_a, t_a, edge_weight=1.0))
    ref_a = _ref_edge_loss(x_a, t_a, edge_weight=1.0)
    assert jnp.allclose(loss_a, ref_a, rtol=1e-5, atol=1e-5), (loss_a, ref_a)

    # 2) Ragged numel (1530): exercises the ignore-class padding path.
    x_b, t_b = _make_inputs(k_b, (2, 3, 15, 17))
    loss_b = jax.block_until_ready(edge_loss(x_b, t_b, edge_weight=1.0))
    ref_b = _ref_edge_loss(x_b, t_b, edge_weight=1.0)
    assert jnp.allclose(loss_b, ref_b, rtol=1e-5, atol=1e-5), (loss_b, ref_b)

    # 3) 5 blocks of 32 rows with the 2-way parallel split: exercises the
    #    ragged split, clamped-block pl.when gate, and multi-step accumulation.
    x_c, t_c = _make_inputs(k_c, (2, 4, 32, 80))
    loss_c = jax.block_until_ready(
        edge_loss(x_c, t_c, edge_weight=0.7, tile_rows=32))
    ref_c = _ref_edge_loss(x_c, t_c, edge_weight=0.7)
    assert jnp.allclose(loss_c, ref_c, rtol=1e-5, atol=1e-5), (loss_c, ref_c)

    # 4) Ragged last block (96 rows, 64-row blocks) + narrow native dtypes
    #    (bf16 logits, int8 targets): exercises the row-level mask path.
    x_d32, t_d32 = _make_inputs(k_d, (1, 1, 96, 128))
    x_d = x_d32.astype(jnp.bfloat16)
    t_d = t_d32.astype(jnp.int8)
    loss_d = jax.block_until_ready(
        edge_loss(x_d, t_d, edge_weight=1.3, tile_rows=64))
    ref_d = _ref_edge_loss(x_d, t_d, edge_weight=1.3)
    assert jnp.allclose(loss_d, ref_d, rtol=1e-5, atol=1e-5), (loss_d, ref_d)

    print("KERNEL_OK")
</pallas_src>

<mosaic_0001>
module attributes {stable_mosaic.version = 11 : i64} {
  func.func @_edge_loss_kernel(%arg0: i32, %arg1: i32, %arg2: memref<32x128xf32, #tpu.memory_space<vmem>>, %arg3: memref<32x128xf32, #tpu.memory_space<vmem>>, %arg4: memref<1x4x8x128xf32, #tpu.memory_space<vmem>>) attributes {dimension_semantics = [#tpu.dimension_semantics<parallel>, #tpu.dimension_semantics<arbitrary>], iteration_bounds = array<i64: 1, 1>, scalar_prefetch = 0 : i64, scratch_operands = 0 : i64, tpu.core_type = #tpu.core_type<tc>, window_params = [{transform_indices = @transform_0, window_bounds = array<i64: 32, 128>}, {transform_indices = @transform_1, window_bounds = array<i64: 32, 128>}, {transform_indices = @transform_2, window_bounds = array<i64: 1, 4, 8, 128>}]} {
    %c0_i32 = arith.constant 0 : i32
    %0 = arith.cmpi eq, %arg1, %c0_i32 : i32
    %1 = arith.extui %0 : i1 to i32
    %c0_i32_0 = arith.constant 0 : i32
    %2 = arith.cmpi ne, %1, %c0_i32_0 : i32
    scf.if %2 {
      %cst_42 = arith.constant 0.000000e+00 : f32
      %57 = vector.broadcast %cst_42 : f32 to vector<1x4x8x128xf32>
      %c0_43 = arith.constant 0 : index
      %c0_44 = arith.constant 0 : index
      %c0_45 = arith.constant 0 : index
      %c0_46 = arith.constant 0 : index
      %58 = vector.load %arg4[%c0_43, %c0_44, %c0_45, %c0_46] : memref<1x4x8x128xf32, #tpu.memory_space<vmem>>, vector<1x4x8x128xf32>
      tpu.vector_store %arg4[%c0_43, %c0_44, %c0_45, %c0_46], %57 {strides = array<i32>} : memref<1x4x8x128xf32, #tpu.memory_space<vmem>>, vector<1x4x8x128xf32>,
    } else {
    }
    %c0 = arith.constant 0 : index
    %c0_1 = arith.constant 0 : index
    %3 = vector.load %arg2[%c0, %c0_1] : memref<32x128xf32, #tpu.memory_space<vmem>>, vector<32x128xf32>
    %c0_2 = arith.constant 0 : index
    %c0_3 = arith.constant 0 : index
    %4 = vector.load %arg3[%c0_2, %c0_3] : memref<32x128xf32, #tpu.memory_space<vmem>>, vector<32x128xf32>
    %5 = vector.shape_cast %3 : vector<32x128xf32> to vector<4x8x128xf32>
    %6 = vector.shape_cast %4 : vector<32x128xf32> to vector<4x8x128xf32>
    %cst = arith.constant 0.000000e+00 : f32
    %7 = vector.broadcast %cst : f32 to vector<4x8x128xf32>
    %8 = arith.maximumf %5, %7 : vector<4x8x128xf32>
    %9 = arith.mulf %5, %6 : vector<4x8x128xf32>
    %10 = arith.subf %8, %9 : vector<4x8x128xf32>
    %11 = math.absf %5 : vector<4x8x128xf32>
    %cst_4 = arith.constant 0.000000e+00 : f32
    %12 = vector.broadcast %cst_4 : f32 to vector<4x8x128xf32>
    %13 = arith.subf %12, %11 : vector<4x8x128xf32>
    %14 = math.exp %13 : vector<4x8x128xf32>
    %15 = math.log1p %14 : vector<4x8x128xf32>
    %16 = arith.addf %10, %15 : vector<4x8x128xf32>
    %cst_5 = arith.constant 1.000000e+00 : f32
    %17 = vector.broadcast %cst_5 : f32 to vector<4x8x128xf32>
    %18 = arith.cmpf oeq, %6, %17 : vector<4x8x128xf32>
    %cst_6 = arith.constant 0.000000e+00 : f32
    %19 = vector.broadcast %cst_6 : f32 to vector<4x8x128xf32>
    %20 = arith.cmpf oeq, %6, %19 : vector<4x8x128xf32>
    %c0_7 = arith.constant 0 : index
    %c0_8 = arith.constant 0 : index
    %c0_9 = arith.constant 0 : index
    %c0_10 = arith.constant 0 : index
    %21 = vector.load %arg4[%c0_7, %c0_8, %c0_9, %c0_10] : memref<1x4x8x128xf32, #tpu.memory_space<vmem>>, vector<1x1x8x128xf32>
    %22 = vector.shape_cast %21 : vector<1x1x8x128xf32> to vector<8x128xf32>
    %23 = arith.extui %18 : vector<4x8x128xi1> to vector<4x8x128xi32>
    %24 = arith.sitofp %23 : vector<4x8x128xi32> to vector<4x8x128xf32>
    %cst_11 = arith.constant dense<0.000000e+00> : vector<8x128xf32>
    %25 = vector.multi_reduction <add>, %24, %cst_11 [0] : vector<4x8x128xf32> to vector<8x128xf32>
    %26 = arith.addf %22, %25 : vector<8x128xf32>
    %c0_12 = arith.constant 0 : index
    %c0_13 = arith.constant 0 : index
    %c0_14 = arith.constant 0 : index
    %c0_15 = arith.constant 0 : index
    %27 = vector.load %arg4[%c0_12, %c0_13, %c0_14, %c0_15] : memref<1x4x8x128xf32, #tpu.memory_space<vmem>>, vector<1x1x8x128xf32>
    %28 = vector.shape_cast %27 : vector<1x1x8x128xf32> to vector<8x128xf32>
    %29 = vector.shape_cast %26 : vector<8x128xf32> to vector<1x1x8x128xf32>
    tpu.vector_store %arg4[%c0_12, %c0_13, %c0_14, %c0_15], %29 {strides = array<i32>} : memref<1x4x8x128xf32, #tpu.memory_space<vmem>>, vector<1x1x8x128xf32>,
    %c0_16 = arith.constant 0 : index
    %c1 = arith.constant 1 : index
    %c0_17 = arith.constant 0 : index
    %c0_18 = arith.constant 0 : index
    %30 = vector.load %arg4[%c0_16, %c1, %c0_17, %c0_18] : memref<1x4x8x128xf32, #tpu.memory_space<vmem>>, vector<1x1x8x128xf32>
    %31 = vector.shape_cast %30 : vector<1x1x8x128xf32> to vector<8x128xf32>
    %32 = arith.extui %20 : vector<4x8x128xi1> to vector<4x8x128xi32>
    %33 = arith.sitofp %32 : vector<4x8x128xi32> to vector<4x8x128xf32>
    %cst_19 = arith.constant dense<0.000000e+00> : vector<8x128xf32>
    %34 = vector.multi_reduction <add>, %33, %cst_19 [0] : vector<4x8x128xf32> to vector<8x128xf32>
    %35 = arith.addf %31, %34 : vector<8x128xf32>
    %c0_20 = arith.constant 0 : index
    %c1_21 = arith.constant 1 : index
    %c0_22 = arith.constant 0 : index
    %c0_23 = arith.constant 0 : index
    %36 = vector.load %arg4[%c0_20, %c1_21, %c0_22, %c0_23] : memref<1x4x8x128xf32, #tpu.memory_space<vmem>>, vector<1x1x8x128xf32>
    %37 = vector.shape_cast %36 : vector<1x1x8x128xf32> to vector<8x128xf32>
    %38 = vector.shape_cast %35 : vector<8x128xf32> to vector<1x1x8x128xf32>
    tpu.vector_store %arg4[%c0_20, %c1_21, %c0_22, %c0_23], %38 {strides = array<i32>} : memref<1x4x8x128xf32, #tpu.memory_space<vmem>>, vector<1x1x8x128xf32>,
    %c0_24 = arith.constant 0 : index
    %c2 = arith.constant 2 : index
    %c0_25 = arith.constant 0 : index
    %c0_26 = arith.constant 0 : index
    %39 = vector.load %arg4[%c0_24, %c2, %c0_25, %c0_26] : memref<1x4x8x128xf32, #tpu.memory_space<vmem>>, vector<1x1x8x128xf32>
    %40 = vector.shape_cast %39 : vector<1x1x8x128xf32> to vector<8x128xf32>
    %cst_27 = arith.constant 0.000000e+00 : f32
    %41 = vector.broadcast %cst_27 : f32 to vector<4x8x128xf32>
    %42 = arith.select %18, %16, %41 : vector<4x8x128xi1>, vector<4x8x128xf32>
    %cst_28 = arith.constant dense<0.000000e+00> : vector<8x128xf32>
    %43 = vector.multi_reduction <add>, %42, %cst_28 [0] : vector<4x8x128xf32> to vector<8x128xf32>
    %44 = arith.addf %40, %43 : vector<8x128xf32>
    %c0_29 = arith.constant 0 : index
    %c2_30 = arith.constant 2 : index
    %c0_31 = arith.constant 0 : index
    %c0_32 = arith.constant 0 : index
    %45 = vector.load %arg4[%c0_29, %c2_30, %c0_31, %c0_32] : memref<1x4x8x128xf32, #tpu.memory_space<vmem>>, vector<1x1x8x128xf32>
    %46 = vector.shape_cast %45 : vector<1x1x8x128xf32> to vector<8x128xf32>
    %47 = vector.shape_cast %44 : vector<8x128xf32> to vector<1x1x8x128xf32>
    tpu.vector_store %arg4[%c0_29, %c2_30, %c0_31, %c0_32], %47 {strides = array<i32>} : memref<1x4x8x128xf32, #tpu.memory_space<vmem>>, vector<1x1x8x128xf32>,
    %c0_33 = arith.constant 0 : index
    %c3 = arith.constant 3 : index
    %c0_34 = arith.constant 0 : index
    %c0_35 = arith.constant 0 : index
    %48 = vector.load %arg4[%c0_33, %c3, %c0_34, %c0_35] : memref<1x4x8x128xf32, #tpu.memory_space<vmem>>, vector<1x1x8x128xf32>
    %49 = vector.shape_cast %48 : vector<1x1x8x128xf32> to vector<8x128xf32>
    %cst_36 = arith.constant 0.000000e+00 : f32
    %50 = vector.broadcast %cst_36 : f32 to vector<4x8x128xf32>
    %51 = arith.select %20, %16, %50 : vector<4x8x128xi1>, vector<4x8x128xf32>
    %cst_37 = arith.constant dense<0.000000e+00> : vector<8x128xf32>
    %52 = vector.multi_reduction <add>, %51, %cst_37 [0] : vector<4x8x128xf32> to vector<8x128xf32>
    %53 = arith.addf %49, %52 : vector<8x128xf32>
    %c0_38 = arith.constant 0 : index
    %c3_39 = arith.constant 3 : index
    %c0_40 = arith.constant 0 : index
    %c0_41 = arith.constant 0 : index
    %54 = vector.load %arg4[%c0_38, %c3_39, %c0_40, %c0_41] : memref<1x4x8x128xf32, #tpu.memory_space<vmem>>, vector<1x1x8x128xf32>
    %55 = vector.shape_cast %54 : vector<1x1x8x128xf32> to vector<8x128xf32>
    %56 = vector.shape_cast %53 : vector<8x128xf32> to vector<1x1x8x128xf32>
    tpu.vector_store %arg4[%c0_38, %c3_39, %c0_40, %c0_41], %56 {strides = array<i32>} : memref<1x4x8x128xf32, #tpu.memory_space<vmem>>, vector<1x1x8x128xf32>,
    return
  }
  func.func @transform_0(%arg0: i32, %arg1: i32) -> (i32, i32) {
    %c1_i32 = arith.constant 1 : i32
    %0 = arith.muli %arg0, %c1_i32 : i32
    %1 = arith.addi %0, %arg1 : i32
    %c0_i32 = arith.constant 0 : i32
    %2 = arith.minsi %1, %c0_i32 : i32
    %c0_i32_0 = arith.constant 0 : i32
    %c0_i32_1 = arith.constant 0 : i32
    return %2, %c0_i32_0 : i32, i32
  }
  func.func @transform_1(%arg0: i32, %arg1: i32) -> (i32, i32) {
    %c1_i32 = arith.constant 1 : i32
    %0 = arith.muli %arg0, %c1_i32 : i32
    %1 = arith.addi %0, %arg1 : i32
    %c0_i32 = arith.constant 0 : i32
    %2 = arith.minsi %1, %c0_i32 : i32
    %c0_i32_0 = arith.constant 0 : i32
    %c0_i32_1 = arith.constant 0 : i32
    return %2, %c0_i32_0 : i32, i32
  }
  func.func @transform_2(%arg0: i32, %arg1: i32) -> (i32, i32, i32, i32) {
    %c0_i32 = arith.constant 0 : i32
    %c0_i32_0 = arith.constant 0 : i32
    %c0_i32_1 = arith.constant 0 : i32
    %c0_i32_2 = arith.constant 0 : i32
    return %arg0, %c0_i32, %c0_i32_0, %c0_i32_1 : i32, i32, i32, i32
  }
}

</mosaic_0001>

<llo_original>
// kernel: tpu_custom_call.1
$region0: #{tpu_custom_call.1}
  #allocation0 [shape = 'u32[]', space=smem, size = 0x4, offset = 0x4, fixed_abs, tag = 'smem constant byte address 0x4 - core index']
  #allocation1 [shape = 'u32[144,128]{1,0:T(1,128)}', space=vmem, size = 0x12000, scoped, tag = 'internal scratch']
  %s0 = inlined_call_operand.hbm [shape: f32[32,128], index: 0, kind: input, shape index: {}]
  %s1 = inlined_call_operand.hbm [shape: f32[32,128], index: 1, kind: input, shape index: {}]
  %s2 = inlined_call_operand.hbm [shape: f32[1,4,8,128], index: 2, kind: output, shape index: {}]
  %s3 = sld [smem:[#allocation0]]
  $region30: #{tpu_custom_call.1} parent=0
    _
  %s5 = ssub.s32 1, %s3
  %s6 = scalar_select 0, %s5, %s3
  $region1: #{tpu_custom_call.1} parent=0
    #allocation2 [shape = 'u8[16384]{0}', space=vmem, size = 0x4000, scoped, tag = 'input window, operand 0, single buffered']
    #allocation3 [shape = 's32[1]{0}', space=sflag, size = 0x4, scoped, tag = 'scoped memory for tpu_custom_call.1']
    #allocation4 [shape = 's32[1]{0}', space=sflag, size = 0x4, scoped, tag = 'scoped memory for tpu_custom_call.1']
    #allocation5 [shape = 'u8[16384]{0}', space=vmem, size = 0x4000, scoped, tag = 'input window, operand 1, single buffered']
    #allocation6 [shape = 's32[1]{0}', space=sflag, size = 0x4, scoped, tag = 'scoped memory for tpu_custom_call.1']
    #allocation7 [shape = 'u8[16384]{0}', space=vmem, size = 0x4000, scoped, tag = 'output window, operand 0, single buffered']
    %7 = vsyncpa [#allocation3], 0
    %8 = vsyncpa [#allocation6], 0
    %9 = vsyncpa [#allocation4], 0
    // Predicated region
    $region2: #{tpu_custom_call.1} parent=1 // pred_check
      _
    $region3: #{tpu_custom_call.1} parent=1 // pred_check_branch
      %11 = sbr.rel (0) target = $region5
    $region4: #{tpu_custom_call.1} parent=1 // pred_region
      %s12 = sadd.s32 0, 0
      %p13 = scmp.lt.s32.totalorder %s12, 0
      %s14 = scalar_select %p13, %s12, 0
      %s15 = smul.u32 4, %s14
      %s17 = ssub.s32 512, 512
      %18 = vsyncadd [#allocation3], %s17
      %s19 = smul.addr %s15, 128
      %s20 = scalar_lea.hbm %s0, %s19
      %s21 = sshll.u32 [#allocation2], 4
      %s22 = int_to_ptr.vmem [resolvable:$true] %s21
      %27 = dma.hbm_to_vmem [thread:$0]  %s20, 512, %s22, [#allocation3], 128, 128, 8
    $region5: #{tpu_custom_call.1} parent=1 // pred_fallthru
      _
    // Predicated region
    $region6: #{tpu_custom_call.1} parent=1 // pred_check
      _
    $region7: #{tpu_custom_call.1} parent=1 // pred_check_branch
      %29 = sbr.rel (0) target = $region9
    $region8: #{tpu_custom_call.1} parent=1 // pred_region
      %s30 = sadd.s32 0, 0
      %p31 = scmp.lt.s32.totalorder %s30, 0
      %s32 = scalar_select %p31, %s30, 0
      %s33 = smul.u32 4, %s32
      %s35 = ssub.s32 512, 512
      %36 = vsyncadd [#allocation6], %s35
      %s37 = smul.addr %s33, 128
      %s38 = scalar_lea.hbm %s1, %s37
      %s39 = sshll.u32 [#allocation5], 4
      %s40 = int_to_ptr.vmem [resolvable:$true] %s39
      %45 = dma.hbm_to_vmem [thread:$0]  %s38, 512, %s40, [#allocation6], 128, 128, 8
    $region9: #{tpu_custom_call.1} parent=1 // pred_fallthru
      _
    // Predicated region
    $region10: #{tpu_custom_call.1} parent=1 // pred_check
      _
    $region11: #{tpu_custom_call.1} parent=1 // pred_check_branch
      %47 = sbr.rel (0) target = $region13
    $region12: #{tpu_custom_call.1} parent=1 // pred_region
      %48 = dma.done [#allocation3], 512
    $region13: #{tpu_custom_call.1} parent=1 // pred_fallthru
      _
    // Predicated region
    $region14: #{tpu_custom_call.1} parent=1 // pred_check
      _
    $region15: #{tpu_custom_call.1} parent=1 // pred_check_branch
      %50 = sbr.rel (0) target = $region17
    $region16: #{tpu_custom_call.1} parent=1 // pred_region
      %51 = dma.done [#allocation6], 512
    $region17: #{tpu_custom_call.1} parent=1 // pred_fallthru
      _
    %s52 = sadd.s32 0, 0
    %p53 = scmp.lt.s32.totalorder %s52, 0
    %s54 = scalar_select %p53, %s52, 0
    %s55 = smul.u32 4, %s54
    %s56 = sadd.s32 0, 0
    %p57 = scmp.lt.s32.totalorder %s56, 0
    %s58 = scalar_select %p57, %s56, 0
    %s59 = smul.u32 4, %s58
    %p60 = scmp.eq.s32.totalorder 0, 0
    // Predicated region
    $region18: #{tpu_custom_call.1} parent=1 // pred_check
      %p61 = pneg %p60
    $region19: #{tpu_custom_call.1} parent=1 // pred_check_branch
      %63 = sbr.rel (%p61) target = $region21
    $region20: #{tpu_custom_call.1} parent=1 // pred_region
      %64 = vst [vmem:[#allocation7] sm:$0xff] 0.0
      %65 = vst [vmem:[#allocation7 + $0x8] sm:$0xff] 0.0
      %66 = vst [vmem:[#allocation7 + $0x10] sm:$0xff] 0.0
      %67 = vst [vmem:[#allocation7 + $0x18] sm:$0xff] 0.0
    $region21: #{tpu_custom_call.1} parent=1 // pred_fallthru
      _
    %v68 = vld [vmem:[#allocation2] sm:$0xff]
    %v69 = vld [vmem:[#allocation2 + $0x8] sm:$0xff]
    %v70 = vld [vmem:[#allocation2 + $0x10] sm:$0xff]
    %v71 = vld [vmem:[#allocation2 + $0x18] sm:$0xff]
    %v72 = vld [vmem:[#allocation5] sm:$0xff]
    %v73 = vld [vmem:[#allocation5 + $0x8] sm:$0xff]
    %v74 = vld [vmem:[#allocation5 + $0x10] sm:$0xff]
    %v75 = vld [vmem:[#allocation5 + $0x18] sm:$0xff]
    %v76 = vmax.f32 %v68, 0.0
    %v77 = vmax.f32 %v69, 0.0
    %v78 = vmax.f32 %v70, 0.0
    %v79 = vmax.f32 %v71, 0.0
    %v80 = vmul.f32 %v68, %v72
    %v81 = vmul.f32 %v69, %v73
    %v82 = vmul.f32 %v70, %v74
    %v83 = vmul.f32 %v71, %v75
    %v84 = vsub.f32 %v76, %v80
    %v85 = vsub.f32 %v77, %v81
    %v86 = vsub.f32 %v78, %v82
    %v87 = vsub.f32 %v79, %v83
    %v88 = vand.u32 2147483647, %v68
    %v89 = vand.u32 2147483647, %v69
    %v90 = vand.u32 2147483647, %v70
    %v91 = vand.u32 2147483647, %v71
    %v92 = vsub.f32 0.0, %v88
    %v93 = vsub.f32 0.0, %v89
    %v94 = vsub.f32 0.0, %v90
    %v95 = vsub.f32 0.0, %v91
    %v96 = vmul.f32 %v92, 1.442695
    %v97 = vpow.pop %v96
    %v98 = vmul.f32 %v93, 1.442695
    %v99 = vpow.pop %v98
    %v100 = vmul.f32 %v94, 1.442695
    %v101 = vpow.pop %v100
    %v102 = vmul.f32 %v95, 1.442695
    %v103 = vpow.pop %v102
    %v104 = vadd.f32 %v97, 1.0
    %v105 = vlog2.pop %v104
    %v106 = vmul.f32 %v105, 0.6931472
    %v107 = vmul.f32 -0.5, %v97
    %v108 = vadd.f32 %v107, 1.0
    %v109 = vmul.f32 %v108, %v97
    %v110 = vand.u32 2147483647, %v97
    %vm111 = vcmp.lt.f32.partialorder %v110, 0.0004427343
    %v112 = vsel %vm111, %v109, %v106
    %v113 = vadd.f32 %v99, 1.0
    %v114 = vlog2.pop %v113
    %v115 = vmul.f32 %v114, 0.6931472
    %v116 = vmul.f32 -0.5, %v99
    %v117 = vadd.f32 %v116, 1.0
    %v118 = vmul.f32 %v117, %v99
    %v119 = vand.u32 2147483647, %v99
    %vm120 = vcmp.lt.f32.partialorder %v119, 0.0004427343
    %v121 = vsel %vm120, %v118, %v115
    %v122 = vadd.f32 %v101, 1.0
    %v123 = vlog2.pop %v122
    %v124 = vmul.f32 %v123, 0.6931472
    %v125 = vmul.f32 -0.5, %v101
    %v126 = vadd.f32 %v125, 1.0
    %v127 = vmul.f32 %v126, %v101
    %v128 = vand.u32 2147483647, %v101
    %vm129 = vcmp.lt.f32.partialorder %v128, 0.0004427343
    %v130 = vsel %vm129, %v127, %v124
    %v131 = vadd.f32 %v103, 1.0
    %v132 = vlog2.pop %v131
    %v133 = vmul.f32 %v132, 0.6931472
    %v134 = vmul.f32 -0.5, %v103
    %v135 = vadd.f32 %v134, 1.0
    %v136 = vmul.f32 %v135, %v103
    %v137 = vand.u32 2147483647, %v103
    %vm138 = vcmp.lt.f32.partialorder %v137, 0.0004427343
    %v139 = vsel %vm138, %v136, %v133
    %v140 = vadd.f32 %v84, %v112
    %v141 = vadd.f32 %v85, %v121
    %v142 = vadd.f32 %v86, %v130
    %v143 = vadd.f32 %v87, %v139
    %vm144 = vcmp.eq.f32.partialorder %v72, 1.0
    %vm145 = vcmp.eq.f32.partialorder %v73, 1.0
    %vm146 = vcmp.eq.f32.partialorder %v74, 1.0
    %vm147 = vcmp.eq.f32.partialorder %v75, 1.0
    %vm148 = vcmp.eq.f32.partialorder %v72, 0.0
    %vm149 = vcmp.eq.f32.partialorder %v73, 0.0
    %vm150 = vcmp.eq.f32.partialorder %v74, 0.0
    %vm151 = vcmp.eq.f32.partialorder %v75, 0.0
    %v152 = vld [vmem:[#allocation7] sm:$0xff]
    %v153 = vsel %vm144, 1, 0
    %v154 = vsel %vm145, 1, 0
    %v155 = vsel %vm146, 1, 0
    %v156 = vsel %vm147, 1, 0
    %v157 = vcvt.s32.f32 %v153
    %v158 = vcvt.s32.f32 %v154
    %v159 = vcvt.s32.f32 %v155
    %v160 = vcvt.s32.f32 %v156
    %v161 = vadd.f32 %v157, %v158
    %v162 = vadd.f32 %v161, %v159
    %v163 = vadd.f32 %v162, %v160
    %v164 = vadd.f32 %v152, %v163
    %165 = vst [vmem:[#allocation7] sm:$0xff] %v164
    %s166 = scalar_lea.vmem [#allocation7], 8
    %v167 = vld [vmem:[%s166] sm:$0xff]
    %v168 = vsel %vm148, 1, 0
    %v169 = vsel %vm149, 1, 0
    %v170 = vsel %vm150, 1, 0
    %v171 = vsel %vm151, 1, 0
    %v172 = vcvt.s32.f32 %v168
    %v173 = vcvt.s32.f32 %v169
    %v174 = vcvt.s32.f32 %v170
    %v175 = vcvt.s32.f32 %v171
    %v176 = vadd.f32 %v172, %v173
    %v177 = vadd.f32 %v176, %v174
    %v178 = vadd.f32 %v177, %v175
    %v179 = vadd.f32 %v167, %v178
    %180 = vst [vmem:[%s166] sm:$0xff] %v179
    %s181 = scalar_lea.vmem [#allocation7], 16
    %v182 = vld [vmem:[%s181] sm:$0xff]
    %v183 = vsel %vm144, %v140, 0.0
    %v184 = vsel %vm145, %v141, 0.0
    %v185 = vsel %vm146, %v142, 0.0
    %v186 = vsel %vm147, %v143, 0.0
    %v187 = vadd.f32 %v183, %v184
    %v188 = vadd.f32 %v187, %v185
    %v189 = vadd.f32 %v188, %v186
    %v190 = vadd.f32 %v182, %v189
    %191 = vst [vmem:[%s181] sm:$0xff] %v190
    %s192 = scalar_lea.vmem [#allocation7], 24
    %v193 = vld [vmem:[%s192] sm:$0xff]
    %v194 = vsel %vm148, %v140, 0.0
    %v195 = vsel %vm149, %v141, 0.0
    %v196 = vsel %vm150, %v142, 0.0
    %v197 = vsel %vm151, %v143, 0.0
    %v198 = vadd.f32 %v194, %v195
    %v199 = vadd.f32 %v198, %v196
    %v200 = vadd.f32 %v199, %v197
    %v201 = vadd.f32 %v193, %v200
    %202 = vst [vmem:[%s192] sm:$0xff] %v201
    // Predicated region
    $region22: #{tpu_custom_call.1} parent=1 // pred_check
      _
    $region23: #{tpu_custom_call.1} parent=1 // pred_check_branch
      %204 = sbr.rel (0) target = $region25
    $region24: #{tpu_custom_call.1} parent=1 // pred_region
      %s206 = ssub.s32 512, 512
      %207 = vsyncadd [#allocation4], %s206
      %s208 = sshll.u32 [#allocation7], 4
      %s209 = int_to_ptr.vmem [resolvable:$true] %s208
      %214 = dma.vmem_to_hbm [thread:$0]  %s209, 512, %s2, [#allocation4], 128, 128, 8
    $region25: #{tpu_custom_call.1} parent=1 // pred_fallthru
      _
    // Predicated region
    $region26: #{tpu_custom_call.1} parent=1 // pred_check
      _
    $region27: #{tpu_custom_call.1} parent=1 // pred_check_branch
      %216 = sbr.rel (0) target = $region29
    $region28: #{tpu_custom_call.1} parent=1 // pred_region
      %217 = dma.done [#allocation4], 512
    $region29: #{tpu_custom_call.1} parent=1 // pred_fallthru
      _
    %218 = vsyncpa [#allocation3], 1
    %219 = vsyncpa [#allocation6], 1
    %220 = vsyncpa [#allocation4], 1

</llo_original>
